<compile_context>
chip_gen: v6e
topology: v6e:2x2x1
jax: 0.10.0
libtpu: 0.0.40
codegen_flags: <defaults>
</compile_context>

<pallas_src>
import functools
import math

import jax
import jax.numpy as jnp
from jax.experimental import pallas as pl
from jax.experimental.pallas import tpu as pltpu


def _bilinear_kernel(c_ref, x_ref, o_ref):
    """o[r, l] = sum_{i<=j} c[i,j] * x[i, r, l] * x[j, r, l].

    c_ref : SMEM (D*D,) float32 -- symmetrized coefficients, row-major flattened
                                    (only the upper triangle is read)
    x_ref : VMEM (D, tr, 128)   -- feature-major, lane-dense column tile (native dtype)
    o_ref : VMEM (tr, 128)      -- lane/sublane-dense output tile (result dtype)
    """
    d = x_ref.shape[0]
    # One full-vreg (tr, 128) slab per feature; widen to f32 in-kernel (VPU).
    rows = [x_ref[i].astype(jnp.float32) for i in range(d)]
    acc = None
    for i in range(d):                       # static unroll; D is tiny
        w = c_ref[i * d + i] * rows[i]       # SMEM scalar * vector (VPU broadcast)
        for j in range(i + 1, d):
            w = w + c_ref[i * d + j] * rows[j]
        term = rows[i] * w
        acc = term if acc is None else acc + term
    o_ref[...] = acc.astype(o_ref.dtype)


@functools.partial(jax.jit, static_argnames=("block_rows",))
def inv_model_forward(x, bi_tensor, *, block_rows=1024):
    """y = einsum('...i,ij,...j->...', x, bi_tensor, x) via a Pallas TPU kernel."""
    *batch_shape, d = x.shape
    n = math.prod(batch_shape)
    out_dtype = jnp.result_type(x.dtype, bi_tensor.dtype)

    # --- tile sizing ----------------------------------------------------------
    itemsize = jnp.dtype(x.dtype).itemsize
    sub = 8 * max(1, 4 // itemsize)          # sublane quantum: f32->8, bf16->16, i8->32
    # Cap so a single x block stays <= ~4 MiB (robust for larger D).
    cap = max(sub, ((4 * 1024 * 1024) // (d * 128 * itemsize)) // sub * sub)
    block_rows = max(sub, (block_rows // sub) * sub)
    rows_needed = -(-n // 128)
    tr = max(sub, min(block_rows, cap, ((rows_needed + sub - 1) // sub) * sub))
    cols_per_step = tr * 128
    num_steps = -(-n // cols_per_step)
    n_pad = num_steps * cols_per_step

    # --- feature-major, lane-dense layout (D, n_pad//128, 128) ----------------
    # Under jit the pad + transpose + reshape fuse into one layout pass; x keeps
    # its native dtype (upcast happens inside the kernel).  Zero-padded columns
    # produce 0 and are sliced off below.
    x2 = x.reshape(n, d)
    if n_pad != n:
        x2 = jnp.pad(x2, ((0, n_pad - n), (0, 0)))
    xt = x2.T.reshape(d, n_pad // 128, 128)

    # --- fold B into exact symmetric upper-triangular coefficients ------------
    # x^T B x == sum_i B_ii x_i^2 + sum_{i<j} (B_ij + B_ji) x_i x_j  (any B)
    b32 = bi_tensor.astype(jnp.float32)
    c = b32 + b32.T
    c = c - jnp.diag(jnp.diag(b32))          # diag: 2*B_ii - B_ii = B_ii
    c_flat = c.reshape(d * d)

    out = pl.pallas_call(
        _bilinear_kernel,
        out_shape=jax.ShapeDtypeStruct((n_pad // 128, 128), out_dtype),
        grid=(num_steps,),
        in_specs=[
            pl.BlockSpec(memory_space=pltpu.MemorySpace.SMEM),   # coefficients (whole)
            pl.BlockSpec((d, tr, 128), lambda i: (0, i, 0)),     # x column tile
        ],
        out_specs=pl.BlockSpec((tr, 128), lambda i: (i, 0)),
        compiler_params=pltpu.CompilerParams(
            dimension_semantics=("parallel",),
        ),
        cost_estimate=pl.CostEstimate(
            flops=n * d * (d + 3),
            transcendentals=0,
            bytes_accessed=n * d * itemsize
            + n * jnp.dtype(out_dtype).itemsize
            + d * d * 4,
        ),
    )(c_flat, xt)

    y = out.reshape(n_pad)[:n]
    return y.reshape(batch_shape)


def make_bi_tensor(dinput=4, init="rand", key=None):
    """Deterministic parameter construction mirroring inv_model.__init__."""
    if key is None:
        key = jax.random.PRNGKey(0)
    if init == "eta":
        diag = -jnp.ones(dinput)
        diag = diag.at[0].set(1.0)
        bi = jnp.diag(diag)
    elif init == "delta":
        bi = jnp.eye(dinput)
    else:  # 'rand'
        bi = jax.random.normal(key, (dinput, dinput), dtype=jnp.float32)
    bi = (bi + bi.T) * 0.5
    return bi


if __name__ == "__main__":
    dinput = 4
    batch, seq = 2, 8

    key = jax.random.PRNGKey(0)
    kx, kb = jax.random.split(key)
    x = jax.random.normal(kx, (batch, seq, dinput), dtype=jnp.float32)
    bi_tensor = make_bi_tensor(dinput=dinput, init="rand", key=kb)

    y = inv_model_forward(x, bi_tensor)
    y = jax.block_until_ready(y)

    # Reference check against plain-JAX einsum (same semantics as torch.einsum).
    y_ref = jnp.einsum("...i,ij,...j->...", x, bi_tensor, x)
    assert y.shape == y_ref.shape == (batch, seq)
    assert jnp.allclose(y, y_ref, atol=1e-5, rtol=1e-5)

    print("KERNEL_OK")
</pallas_src>

<mosaic_0001>
module attributes {stable_mosaic.version = 11 : i64} {
  func.func @_bilinear_kernel(%arg0: i32, %arg1: memref<16xf32, #tpu.memory_space<smem>>, %arg2: memref<4x8x128xf32, #tpu.memory_space<vmem>>, %arg3: memref<8x128xf32, #tpu.memory_space<vmem>>) attributes {dimension_semantics = [#tpu.dimension_semantics<parallel>], iteration_bounds = array<i64: 1>, scalar_prefetch = 0 : i64, scratch_operands = 0 : i64, tpu.core_type = #tpu.core_type<tc>, window_params = [{transform_indices = @transform_0, window_bounds = array<i64: 16>}, {transform_indices = @transform_1, window_bounds = array<i64: 4, 8, 128>}, {transform_indices = @transform_2, window_bounds = array<i64: 8, 128>}]} {
    %c0 = arith.constant 0 : index
    %c0_0 = arith.constant 0 : index
    %c0_1 = arith.constant 0 : index
    %0 = vector.load %arg2[%c0, %c0_0, %c0_1] : memref<4x8x128xf32, #tpu.memory_space<vmem>>, vector<1x8x128xf32>
    %1 = vector.shape_cast %0 : vector<1x8x128xf32> to vector<8x128xf32>
    %c1 = arith.constant 1 : index
    %c0_2 = arith.constant 0 : index
    %c0_3 = arith.constant 0 : index
    %2 = vector.load %arg2[%c1, %c0_2, %c0_3] : memref<4x8x128xf32, #tpu.memory_space<vmem>>, vector<1x8x128xf32>
    %3 = vector.shape_cast %2 : vector<1x8x128xf32> to vector<8x128xf32>
    %c2 = arith.constant 2 : index
    %c0_4 = arith.constant 0 : index
    %c0_5 = arith.constant 0 : index
    %4 = vector.load %arg2[%c2, %c0_4, %c0_5] : memref<4x8x128xf32, #tpu.memory_space<vmem>>, vector<1x8x128xf32>
    %5 = vector.shape_cast %4 : vector<1x8x128xf32> to vector<8x128xf32>
    %c3 = arith.constant 3 : index
    %c0_6 = arith.constant 0 : index
    %c0_7 = arith.constant 0 : index
    %6 = vector.load %arg2[%c3, %c0_6, %c0_7] : memref<4x8x128xf32, #tpu.memory_space<vmem>>, vector<1x8x128xf32>
    %7 = vector.shape_cast %6 : vector<1x8x128xf32> to vector<8x128xf32>
    %c0_8 = arith.constant 0 : index
    %8 = memref.load %arg1[%c0_8] : memref<16xf32, #tpu.memory_space<smem>>
    %9 = vector.broadcast %8 : f32 to vector<8x128xf32>
    %10 = arith.mulf %9, %1 : vector<8x128xf32>
    %c1_9 = arith.constant 1 : index
    %11 = memref.load %arg1[%c1_9] : memref<16xf32, #tpu.memory_space<smem>>
    %12 = vector.broadcast %11 : f32 to vector<8x128xf32>
    %13 = arith.mulf %12, %3 : vector<8x128xf32>
    %14 = arith.addf %10, %13 : vector<8x128xf32>
    %c2_10 = arith.constant 2 : index
    %15 = memref.load %arg1[%c2_10] : memref<16xf32, #tpu.memory_space<smem>>
    %16 = vector.broadcast %15 : f32 to vector<8x128xf32>
    %17 = arith.mulf %16, %5 : vector<8x128xf32>
    %18 = arith.addf %14, %17 : vector<8x128xf32>
    %c3_11 = arith.constant 3 : index
    %19 = memref.load %arg1[%c3_11] : memref<16xf32, #tpu.memory_space<smem>>
    %20 = vector.broadcast %19 : f32 to vector<8x128xf32>
    %21 = arith.mulf %20, %7 : vector<8x128xf32>
    %22 = arith.addf %18, %21 : vector<8x128xf32>
    %23 = arith.mulf %1, %22 : vector<8x128xf32>
    %c5 = arith.constant 5 : index
    %24 = memref.load %arg1[%c5] : memref<16xf32, #tpu.memory_space<smem>>
    %25 = vector.broadcast %24 : f32 to vector<8x128xf32>
    %26 = arith.mulf %25, %3 : vector<8x128xf32>
    %c6 = arith.constant 6 : index
    %27 = memref.load %arg1[%c6] : memref<16xf32, #tpu.memory_space<smem>>
    %28 = vector.broadcast %27 : f32 to vector<8x128xf32>
    %29 = arith.mulf %28, %5 : vector<8x128xf32>
    %30 = arith.addf %26, %29 : vector<8x128xf32>
    %c7 = arith.constant 7 : index
    %31 = memref.load %arg1[%c7] : memref<16xf32, #tpu.memory_space<smem>>
    %32 = vector.broadcast %31 : f32 to vector<8x128xf32>
    %33 = arith.mulf %32, %7 : vector<8x128xf32>
    %34 = arith.addf %30, %33 : vector<8x128xf32>
    %35 = arith.mulf %3, %34 : vector<8x128xf32>
    %36 = arith.addf %23, %35 : vector<8x128xf32>
    %c10 = arith.constant 10 : index
    %37 = memref.load %arg1[%c10] : memref<16xf32, #tpu.memory_space<smem>>
    %38 = vector.broadcast %37 : f32 to vector<8x128xf32>
    %39 = arith.mulf %38, %5 : vector<8x128xf32>
    %c11 = arith.constant 11 : index
    %40 = memref.load %arg1[%c11] : memref<16xf32, #tpu.memory_space<smem>>
    %41 = vector.broadcast %40 : f32 to vector<8x128xf32>
    %42 = arith.mulf %41, %7 : vector<8x128xf32>
    %43 = arith.addf %39, %42 : vector<8x128xf32>
    %44 = arith.mulf %5, %43 : vector<8x128xf32>
    %45 = arith.addf %36, %44 : vector<8x128xf32>
    %c15 = arith.constant 15 : index
    %46 = memref.load %arg1[%c15] : memref<16xf32, #tpu.memory_space<smem>>
    %47 = vector.broadcast %46 : f32 to vector<8x128xf32>
    %48 = arith.mulf %47, %7 : vector<8x128xf32>
    %49 = arith.mulf %7, %48 : vector<8x128xf32>
    %50 = arith.addf %45, %49 : vector<8x128xf32>
    %c0_12 = arith.constant 0 : index
    %c0_13 = arith.constant 0 : index
    %51 = vector.load %arg3[%c0_12, %c0_13] : memref<8x128xf32, #tpu.memory_space<vmem>>, vector<8x128xf32>
    tpu.vector_store %arg3[%c0_12, %c0_13], %50 {strides = array<i32>} : memref<8x128xf32, #tpu.memory_space<vmem>>, vector<8x128xf32>,
    return
  }
  func.func @transform_0(%arg0: i32) -> i32 {
    %c0_i32 = arith.constant 0 : i32
    %c0_i32_0 = arith.constant 0 : i32
    return %c0_i32 : i32
  }
  func.func @transform_1(%arg0: i32) -> (i32, i32, i32) {
    %c0_i32 = arith.constant 0 : i32
    %c0_i32_0 = arith.constant 0 : i32
    %c0_i32_1 = arith.constant 0 : i32
    return %c0_i32, %arg0, %c0_i32_0 : i32, i32, i32
  }
  func.func @transform_2(%arg0: i32) -> (i32, i32) {
    %c0_i32 = arith.constant 0 : i32
    %c0_i32_0 = arith.constant 0 : i32
    return %arg0, %c0_i32 : i32, i32
  }
}

</mosaic_0001>

<llo_original>
// kernel: inv_model_forward.1
$region0: #{inv_model_forward.1}
  #allocation0 [shape = 'u32[]', space=smem, size = 0x4, offset = 0x4, fixed_abs, tag = 'smem constant byte address 0x4 - core index']
  #allocation1 [shape = 'u32[144,128]{1,0:T(1,128)}', space=vmem, size = 0x12000, scoped, tag = 'internal scratch']
  %s0 = inlined_call_operand.vmem [shape: f32[16], index: 0, kind: input, shape index: {}]
  %s1 = inlined_call_operand.vmem [shape: f32[4,8,128], index: 1, kind: input, shape index: {}]
  %s2 = inlined_call_operand.vmem [shape: f32[8,128], index: 2, kind: output, shape index: {}]
  %s3 = sld [smem:[#allocation0]]
  $region22: #{inv_model_forward.1} parent=0
    _
  %s5 = ssub.s32 1, %s3
  %s6 = scalar_select 0, %s5, %s3
  $region1: #{inv_model_forward.1} parent=0
    #allocation2 [shape = 'u8[512]{0}', space=smem, size = 0x200, scoped, tag = 'input window, operand 0, single buffered']
    #allocation3 [shape = 's32[1]{0}', space=sflag, size = 0x4, scoped, tag = 'scoped memory for inv_model_forward.1']
    %7 = vsyncpa [#allocation3], 0
    // Predicated region
    $region2: #{inv_model_forward.1} parent=1 // pred_check
      _
    $region3: #{inv_model_forward.1} parent=1 // pred_check_branch
      %9 = sbr.rel (0) target = $region5
    $region4: #{inv_model_forward.1} parent=1 // pred_region
      %s11 = ssub.s32 16, 16
      %12 = vsyncadd [#allocation3], %s11
      %s14 = sshll.u32 %s0, 4
      %s15 = int_to_ptr.vmem [resolvable:$true] %s14
      %17 = dma.vmem_to_smem %s15, 16, [#allocation2], [#allocation3]
    $region5: #{inv_model_forward.1} parent=1 // pred_fallthru
      _
    // Predicated region
    $region6: #{inv_model_forward.1} parent=1 // pred_check
      _
    $region7: #{inv_model_forward.1} parent=1 // pred_check_branch
      %19 = sbr.rel (0) target = $region9
    $region8: #{inv_model_forward.1} parent=1 // pred_region
      _
    $region9: #{inv_model_forward.1} parent=1 // pred_fallthru
      _
    // Predicated region
    $region10: #{inv_model_forward.1} parent=1 // pred_check
      _
    $region11: #{inv_model_forward.1} parent=1 // pred_check_branch
      %21 = sbr.rel (0) target = $region13
    $region12: #{inv_model_forward.1} parent=1 // pred_region
      %22 = dma.done [#allocation3], 16
    $region13: #{inv_model_forward.1} parent=1 // pred_fallthru
      _
    %23 = sfence
    %v24 = vld [vmem:[%s1] sm:$0xff]
    %s25 = scalar_lea.vmem %s1, 8
    %v26 = vld [vmem:[%s25] sm:$0xff]
    %s27 = scalar_lea.vmem %s1, 16
    %v28 = vld [vmem:[%s27] sm:$0xff]
    %s29 = scalar_lea.vmem %s1, 24
    %v30 = vld [vmem:[%s29] sm:$0xff]
    %s31 = sld [smem:[#allocation2]]
    %v32 = vstv %s31
    %v33 = vmul.f32 %v32, %v24
    %s34 = sld [smem:[#allocation2 + $0x1]]
    %v35 = vstv %s34
    %v36 = vmul.f32 %v35, %v26
    %v37 = vadd.f32 %v33, %v36
    %s38 = sld [smem:[#allocation2 + $0x2]]
    %v39 = vstv %s38
    %v40 = vmul.f32 %v39, %v28
    %v41 = vadd.f32 %v37, %v40
    %s42 = sld [smem:[#allocation2 + $0x3]]
    %v43 = vstv %s42
    %v44 = vmul.f32 %v43, %v30
    %v45 = vadd.f32 %v41, %v44
    %v46 = vmul.f32 %v24, %v45
    %s47 = sld [smem:[#allocation2 + $0x5]]
    %v48 = vstv %s47
    %v49 = vmul.f32 %v48, %v26
    %s50 = sld [smem:[#allocation2 + $0x6]]
    %v51 = vstv %s50
    %v52 = vmul.f32 %v51, %v28
    %v53 = vadd.f32 %v49, %v52
    %s54 = sld [smem:[#allocation2 + $0x7]]
    %v55 = vstv %s54
    %v56 = vmul.f32 %v55, %v30
    %v57 = vadd.f32 %v53, %v56
    %v58 = vmul.f32 %v26, %v57
    %v59 = vadd.f32 %v46, %v58
    %s60 = sld [smem:[#allocation2 + $0xa]]
    %v61 = vstv %s60
    %v62 = vmul.f32 %v61, %v28
    %s63 = sld [smem:[#allocation2 + $0xb]]
    %v64 = vstv %s63
    %v65 = vmul.f32 %v64, %v30
    %v66 = vadd.f32 %v62, %v65
    %v67 = vmul.f32 %v28, %v66
    %v68 = vadd.f32 %v59, %v67
    %s69 = sld [smem:[#allocation2 + $0xf]]
    %v70 = vstv %s69
    %v71 = vmul.f32 %v70, %v30
    %v72 = vmul.f32 %v30, %v71
    %v73 = vadd.f32 %v68, %v72
    %74 = vst [vmem:[%s2] sm:$0xff] %v73
    // Predicated region
    $region14: #{inv_model_forward.1} parent=1 // pred_check
      _
    $region15: #{inv_model_forward.1} parent=1 // pred_check_branch
      %76 = sbr.rel (0) target = $region17
    $region16: #{inv_model_forward.1} parent=1 // pred_region
      _
    $region17: #{inv_model_forward.1} parent=1 // pred_fallthru
      _
    // Predicated region
    $region18: #{inv_model_forward.1} parent=1 // pred_check
      _
    $region19: #{inv_model_forward.1} parent=1 // pred_check_branch
      %78 = sbr.rel (0) target = $region21
    $region20: #{inv_model_forward.1} parent=1 // pred_region
      _
    $region21: #{inv_model_forward.1} parent=1 // pred_fallthru
      _
    %79 = vsyncpa [#allocation3], 1

</llo_original>
